<compile_context>
chip_gen: v6e
topology: v6e:2x2x1
jax: 0.10.0
libtpu: 0.0.40
codegen_flags: <defaults>
</compile_context>

<pallas_src>
import functools

import jax
import jax.numpy as jnp
from jax import lax
from jax.experimental import pallas as pl
from jax.experimental.pallas import tpu as pltpu


def _emb_ln_kernel(ids_ref, word_hbm, pos_ref, gamma_ref, beta_ref, out_ref,
                   wbuf, sem, *, eps, seq_tile, n_j, s_pad, unroll):
    b = pl.program_id(0)
    j = pl.program_id(1)
    slot = j % 2

    def start_gather(tile_j, slot_idx):
        base = b * s_pad + tile_j * seq_tile

        def body(t, carry):
            row = ids_ref[base + t]
            pltpu.make_async_copy(
                word_hbm.at[pl.ds(row, 1), :],
                wbuf.at[slot_idx, pl.ds(t, 1), :],
                sem.at[slot_idx],
            ).start()
            return carry

        lax.fori_loop(0, seq_tile, body, 0, unroll=unroll)

    # Prime the pipeline at the first tile of each batch row.
    @pl.when(j == 0)
    def _():
        start_gather(0, 0)

    # Prefetch the NEXT tile of this row into the other slot *before* waiting
    # on the current one (ids scalars are read ahead of the .wait(); the
    # gather overlaps this step's LayerNorm and output writeback).
    if n_j > 1:
        @pl.when(j + 1 < n_j)
        def _():
            start_gather(j + 1, (j + 1) % 2)

    # Single aggregate wait: one (seq_tile, H) descriptor's byte count equals
    # the seq_tile (1, H) row copies issued on this slot's semaphore.
    pltpu.make_async_copy(word_hbm.at[pl.ds(0, seq_tile), :],
                          wbuf.at[slot], sem.at[slot]).wait()

    # ---- add + LayerNorm over the (seq_tile, H) tile, f32 math --------------
    p_start = pl.multiple_of(j * seq_tile, seq_tile)
    x = (wbuf[slot].astype(jnp.float32)
         + pos_ref[pl.ds(p_start, seq_tile), :].astype(jnp.float32))
    mean = jnp.mean(x, axis=-1, keepdims=True)
    xc = x - mean                                    # bound once, reused twice
    var = jnp.mean(xc * xc, axis=-1, keepdims=True)  # biased var (torch LN)
    y = xc * lax.rsqrt(var + eps)
    out_ref[...] = (y * gamma_ref[...].astype(jnp.float32)
                    + beta_ref[...].astype(jnp.float32)).astype(out_ref.dtype)


def nano_embeddings(input_ids, word_table, pos_table, gamma, beta,
                    position_ids=None, *, eps=1e-12, seq_tile=None,
                    out_dtype=None):
    """Forward pass of NanoEmbeddings. Dropout is identity (eval mode)."""
    if position_ids is not None:
        # TODO(synk): custom position_ids would need a second row-gather stream.
        raise NotImplementedError("only default arange position_ids supported")

    B, S = input_ids.shape
    V, H = word_table.shape
    P = pos_table.shape[0]
    if S > P:
        raise ValueError(
            f"sequence length {S} exceeds max_position_embeddings {P}")
    out_dtype = word_table.dtype if out_dtype is None else out_dtype

    # --- sequence tile selection ---------------------------------------------
    if seq_tile is None:
        seq_tile = 0
        for cand in (256, 128, 64, 32, 16, 8):   # prefer exact divisor of S
            if S % cand == 0:
                seq_tile = cand
                break
        if seq_tile == 0:
            seq_tile = min(256, max(8, -(-S // 8) * 8))
        if H >= 4096:                            # keep 2x-buffered VMEM modest (v7x: 64 MiB)
            seq_tile = min(seq_tile, 128)
    seq_tile = max(8, (seq_tile // 8) * 8)
    if V >= 8:                                   # aggregate-wait descriptor stays in bounds
        seq_tile = min(seq_tile, (V // 8) * 8)
    n_j = -(-S // seq_tile)
    s_pad = n_j * seq_tile

    ids = input_ids.astype(jnp.int32)
    if s_pad != S:
        ids = jnp.pad(ids, ((0, 0), (0, s_pad - S)))     # id 0 (pad token) is a valid row
    flat_ids = ids.reshape(B * s_pad)                    # 1-D scalar-prefetch array (SMEM)

    # VMEM-resident position slab of exactly s_pad rows.
    if s_pad <= P:
        pos = pos_table[:s_pad]
    else:  # only when S <= P < s_pad; padded positions feed discarded tokens
        pos = jnp.pad(pos_table, ((0, s_pad - P), (0, 0)))

    # --- honest cost estimate (advisory) --------------------------------------
    n_tok = B * s_pad
    w_it = word_table.dtype.itemsize
    o_it = jnp.dtype(out_dtype).itemsize
    cost = pl.CostEstimate(
        flops=7 * n_tok * H,
        transcendentals=n_tok,
        bytes_accessed=(n_tok * H * w_it                  # word-row gather
                        + s_pad * H * pos.dtype.itemsize  # resident pos slab
                        + 2 * H * 4                       # gamma / beta
                        + n_tok * H * o_it                # output store
                        + n_tok * 4),                     # token ids
    )

    # --- VMEM budget (double-buffered gather + resident pos + pipelined out) --
    vmem_est = (2 * seq_tile * H * w_it
                + s_pad * H * pos.dtype.itemsize
                + 2 * seq_tile * H * o_it
                + 4 * H * 4)
    vmem_limit = int(min(64 << 20, max(32 << 20, 2 * vmem_est + (2 << 20))))

    grid_spec = pltpu.PrefetchScalarGridSpec(
        num_scalar_prefetch=1,
        grid=(B, n_j),
        in_specs=[
            pl.BlockSpec(memory_space=pl.ANY),                        # word table, raw HBM
            pl.BlockSpec((s_pad, H), lambda b, j, ids_s: (0, 0)),     # pos slab, VMEM-resident
            pl.BlockSpec((1, H), lambda b, j, ids_s: (0, 0)),         # gamma
            pl.BlockSpec((1, H), lambda b, j, ids_s: (0, 0)),         # beta
        ],
        out_specs=pl.BlockSpec((seq_tile, H),
                               lambda b, j, ids_s: (b * n_j + j, 0)),
        scratch_shapes=[
            pltpu.VMEM((2, seq_tile, H), word_table.dtype),           # gather double-buffer
            pltpu.SemaphoreType.DMA((2,)),                            # one sem per slot
        ],
    )

    unroll = seq_tile if seq_tile <= 32 else 8

    out = pl.pallas_call(
        functools.partial(_emb_ln_kernel, eps=eps, seq_tile=seq_tile,
                          n_j=n_j, s_pad=s_pad, unroll=unroll),
        out_shape=jax.ShapeDtypeStruct((B * s_pad, H), out_dtype),
        grid_spec=grid_spec,
        compiler_params=pltpu.CompilerParams(
            dimension_semantics=("parallel", "arbitrary"),
            vmem_limit_bytes=vmem_limit),
        cost_estimate=cost,
    )(flat_ids, word_table, pos, gamma.reshape(1, H), beta.reshape(1, H))

    out = out.reshape(B, s_pad, H)
    return out if s_pad == S else out[:, :S, :]


def _reference(input_ids, word_table, pos_table, gamma, beta, eps=1e-12):
    B, S = input_ids.shape
    w = word_table[input_ids]                              # [B, S, H]
    p = pos_table[jnp.arange(S)][None, :, :]               # [1, S, H]
    x = w + p
    mean = jnp.mean(x, axis=-1, keepdims=True)
    var = jnp.mean(jnp.square(x - mean), axis=-1, keepdims=True)
    return (x - mean) * jax.lax.rsqrt(var + eps) * gamma + beta


if __name__ == "__main__":
    # Small config consistent with NanoConfig (scaled down).
    vocab_size = 100
    hidden_size = 128
    max_position_embeddings = 16
    pad_token_id = 0
    initializer_range = 0.02
    layer_norm_eps = 1e-12

    key = jax.random.PRNGKey(0)
    k_w, k_p, k_ids1, k_ids2, k_ids3 = jax.random.split(key, 5)

    word_table = initializer_range * jax.random.normal(
        k_w, (vocab_size, hidden_size), dtype=jnp.float32)
    word_table = word_table.at[pad_token_id].set(0.0)      # nn.Embedding(padding_idx=0)
    pos_table = initializer_range * jax.random.normal(
        k_p, (max_position_embeddings, hidden_size), dtype=jnp.float32)
    gamma = jnp.ones((hidden_size,), dtype=jnp.float32)
    beta = jnp.zeros((hidden_size,), dtype=jnp.float32)

    # Test 1: one tile per batch row (B=2, S=8 -> grid (2, 1)).
    ids1 = jax.random.randint(k_ids1, (2, 8), 0, vocab_size, dtype=jnp.int32)
    out1 = jax.block_until_ready(
        nano_embeddings(ids1, word_table, pos_table, gamma, beta,
                        eps=layer_norm_eps))
    ref1 = _reference(ids1, word_table, pos_table, gamma, beta, eps=layer_norm_eps)
    assert out1.shape == (2, 8, hidden_size)
    assert jnp.allclose(out1, ref1, atol=1e-5, rtol=1e-5), "mismatch vs reference (test 1)"

    # Test 2: double-buffered gather path (B=2, S=16, tile=8 -> grid (2, 2)).
    ids2 = jax.random.randint(k_ids2, (2, 16), 0, vocab_size, dtype=jnp.int32)
    out2 = jax.block_until_ready(
        nano_embeddings(ids2, word_table, pos_table, gamma, beta,
                        eps=layer_norm_eps, seq_tile=8))
    ref2 = _reference(ids2, word_table, pos_table, gamma, beta, eps=layer_norm_eps)
    assert out2.shape == (2, 16, hidden_size)
    assert jnp.allclose(out2, ref2, atol=1e-5, rtol=1e-5), "mismatch vs reference (test 2)"

    # Test 3: ragged sequence (B=2, S=12, tile=8 -> padding + post-slice path).
    ids3 = jax.random.randint(k_ids3, (2, 12), 0, vocab_size, dtype=jnp.int32)
    out3 = jax.block_until_ready(
        nano_embeddings(ids3, word_table, pos_table, gamma, beta,
                        eps=layer_norm_eps, seq_tile=8))
    ref3 = _reference(ids3, word_table, pos_table, gamma, beta, eps=layer_norm_eps)
    assert out3.shape == (2, 12, hidden_size)
    assert jnp.allclose(out3, ref3, atol=1e-5, rtol=1e-5), "mismatch vs reference (test 3)"

    print("KERNEL_OK")
</pallas_src>

<mosaic_0001>
module attributes {stable_mosaic.version = 11 : i64} {
  func.func @_emb_ln_kernel(%arg0: i32, %arg1: i32, %arg2: memref<16xi32, #tpu.memory_space<smem>>, %arg3: memref<100x128xf32, #tpu.memory_space<any>>, %arg4: memref<8x128xf32, #tpu.memory_space<vmem>>, %arg5: memref<1x128xf32, #tpu.memory_space<vmem>>, %arg6: memref<1x128xf32, #tpu.memory_space<vmem>>, %arg7: memref<8x128xf32, #tpu.memory_space<vmem>>, %arg8: memref<2x8x128xf32, #tpu.memory_space<vmem>>, %arg9: memref<2x!tpu.dma_semaphore, #tpu.memory_space<semaphore_mem>>) attributes {dimension_semantics = [#tpu.dimension_semantics<parallel>, #tpu.dimension_semantics<arbitrary>], iteration_bounds = array<i64: 2, 1>, scalar_prefetch = 1 : i64, scratch_operands = 2 : i64, tpu.core_type = #tpu.core_type<tc>, window_params = [{}, {pipeline_mode = #tpu.pipeline_mode<synchronous>, transform_indices = @transform_1, window_bounds = array<i64: 8, 128>}, {pipeline_mode = #tpu.pipeline_mode<synchronous>, transform_indices = @transform_2, window_bounds = array<i64: 1, 128>}, {pipeline_mode = #tpu.pipeline_mode<synchronous>, transform_indices = @transform_3, window_bounds = array<i64: 1, 128>}, {transform_indices = @transform_4, window_bounds = array<i64: 8, 128>}]} {
    %c2_i32 = arith.constant 2 : i32
    %c0_i32 = arith.constant 0 : i32
    %0 = arith.cmpi eq, %c2_i32, %c0_i32 : i32
    %c1_i32 = arith.constant 1 : i32
    %1 = arith.select %0, %c1_i32, %c2_i32 : i32
    %2 = arith.remsi %arg1, %1 : i32
    %c0_i32_0 = arith.constant 0 : i32
    %3 = arith.cmpi ne, %2, %c0_i32_0 : i32
    %c0_i32_1 = arith.constant 0 : i32
    %4 = arith.cmpi slt, %2, %c0_i32_1 : i32
    %c0_i32_2 = arith.constant 0 : i32
    %5 = arith.cmpi slt, %1, %c0_i32_2 : i32
    %6 = arith.xori %4, %5 : i1
    %7 = arith.andi %6, %3 : i1
    %8 = arith.addi %2, %1 : i32
    %9 = arith.select %7, %8, %2 : i32
    %c0_i32_3 = arith.constant 0 : i32
    %10 = arith.cmpi eq, %arg1, %c0_i32_3 : i32
    %11 = arith.extui %10 : i1 to i32
    %c0_i32_4 = arith.constant 0 : i32
    %12 = arith.cmpi ne, %11, %c0_i32_4 : i32
    scf.if %12 {
      %c8_i32_21 = arith.constant 8 : i32
      %49 = arith.muli %arg0, %c8_i32_21 : i32
      %c0_i32_22 = arith.constant 0 : i32
      %50 = arith.addi %49, %c0_i32_22 : i32
      %c0_i32_23 = arith.constant 0 : i32
      %51 = arith.addi %50, %c0_i32_23 : i32
      %52 = arith.index_cast %51 : i32 to index
      %53 = memref.load %arg2[%52] : memref<16xi32, #tpu.memory_space<smem>>
      %c0_i32_24 = arith.constant 0 : i32
      %c0_i32_25 = arith.constant 0 : i32
      %c0_i32_26 = arith.constant 0 : i32
      %54 = tpu.memref_slice %arg3[%53, %c0_i32_26] : memref<100x128xf32, #tpu.memory_space<any>> -> memref<1x128xf32, #tpu.memory_space<any>>
      %c0_i32_27 = arith.constant 0 : i32
      %55 = tpu.memref_slice %arg8[%c0_i32_24, %c0_i32_23, %c0_i32_27] : memref<2x8x128xf32, #tpu.memory_space<vmem>> -> memref<1x1x128xf32, #tpu.memory_space<vmem>>
      %56 = tpu.memref_squeeze %55 : memref<1x1x128xf32, #tpu.memory_space<vmem>> -> memref<1x128xf32, #tpu.memory_space<vmem>>
      %57 = tpu.memref_slice %arg9[%c0_i32_25] : memref<2x!tpu.dma_semaphore, #tpu.memory_space<semaphore_mem>> -> memref<1x!tpu.dma_semaphore, #tpu.memory_space<semaphore_mem>>
      %58 = tpu.memref_squeeze %57 : memref<1x!tpu.dma_semaphore, #tpu.memory_space<semaphore_mem>> -> memref<!tpu.dma_semaphore, #tpu.memory_space<semaphore_mem>>
      tpu.enqueue_dma source(%54 : memref<1x128xf32, #tpu.memory_space<any>>) target(%56 : memref<1x128xf32, #tpu.memory_space<vmem>>) target_semaphore(%58 : memref<!tpu.dma_semaphore, #tpu.memory_space<semaphore_mem>>)
      %c1_i32_28 = arith.constant 1 : i32
      %59 = arith.addi %50, %c1_i32_28 : i32
      %60 = arith.index_cast %59 : i32 to index
      %61 = memref.load %arg2[%60] : memref<16xi32, #tpu.memory_space<smem>>
      %c0_i32_29 = arith.constant 0 : i32
      %c0_i32_30 = arith.constant 0 : i32
      %c0_i32_31 = arith.constant 0 : i32
      %62 = tpu.memref_slice %arg3[%61, %c0_i32_31] : memref<100x128xf32, #tpu.memory_space<any>> -> memref<1x128xf32, #tpu.memory_space<any>>
      %c0_i32_32 = arith.constant 0 : i32
      %63 = tpu.memref_slice %arg8[%c0_i32_29, %c1_i32_28, %c0_i32_32] : memref<2x8x128xf32, #tpu.memory_space<vmem>> -> memref<1x1x128xf32, #tpu.memory_space<vmem>>
      %64 = tpu.memref_squeeze %63 : memref<1x1x128xf32, #tpu.memory_space<vmem>> -> memref<1x128xf32, #tpu.memory_space<vmem>>
      %65 = tpu.memref_slice %arg9[%c0_i32_30] : memref<2x!tpu.dma_semaphore, #tpu.memory_space<semaphore_mem>> -> memref<1x!tpu.dma_semaphore, #tpu.memory_space<semaphore_mem>>
      %66 = tpu.memref_squeeze %65 : memref<1x!tpu.dma_semaphore, #tpu.memory_space<semaphore_mem>> -> memref<!tpu.dma_semaphore, #tpu.memory_space<semaphore_mem>>
      tpu.enqueue_dma source(%62 : memref<1x128xf32, #tpu.memory_space<any>>) target(%64 : memref<1x128xf32, #tpu.memory_space<vmem>>) target_semaphore(%66 : memref<!tpu.dma_semaphore, #tpu.memory_space<semaphore_mem>>)
      %c2_i32_33 = arith.constant 2 : i32
      %67 = arith.addi %50, %c2_i32_33 : i32
      %68 = arith.index_cast %67 : i32 to index
      %69 = memref.load %arg2[%68] : memref<16xi32, #tpu.memory_space<smem>>
      %c0_i32_34 = arith.constant 0 : i32
      %c0_i32_35 = arith.constant 0 : i32
      %c0_i32_36 = arith.constant 0 : i32
      %70 = tpu.memref_slice %arg3[%69, %c0_i32_36] : memref<100x128xf32, #tpu.memory_space<any>> -> memref<1x128xf32, #tpu.memory_space<any>>
      %c0_i32_37 = arith.constant 0 : i32
      %71 = tpu.memref_slice %arg8[%c0_i32_34, %c2_i32_33, %c0_i32_37] : memref<2x8x128xf32, #tpu.memory_space<vmem>> -> memref<1x1x128xf32, #tpu.memory_space<vmem>>
      %72 = tpu.memref_squeeze %71 : memref<1x1x128xf32, #tpu.memory_space<vmem>> -> memref<1x128xf32, #tpu.memory_space<vmem>>
      %73 = tpu.memref_slice %arg9[%c0_i32_35] : memref<2x!tpu.dma_semaphore, #tpu.memory_space<semaphore_mem>> -> memref<1x!tpu.dma_semaphore, #tpu.memory_space<semaphore_mem>>
      %74 = tpu.memref_squeeze %73 : memref<1x!tpu.dma_semaphore, #tpu.memory_space<semaphore_mem>> -> memref<!tpu.dma_semaphore, #tpu.memory_space<semaphore_mem>>
      tpu.enqueue_dma source(%70 : memref<1x128xf32, #tpu.memory_space<any>>) target(%72 : memref<1x128xf32, #tpu.memory_space<vmem>>) target_semaphore(%74 : memref<!tpu.dma_semaphore, #tpu.memory_space<semaphore_mem>>)
      %c3_i32 = arith.constant 3 : i32
      %75 = arith.addi %50, %c3_i32 : i32
      %76 = arith.index_cast %75 : i32 to index
      %77 = memref.load %arg2[%76] : memref<16xi32, #tpu.memory_space<smem>>
      %c0_i32_38 = arith.constant 0 : i32
      %c0_i32_39 = arith.constant 0 : i32
      %c0_i32_40 = arith.constant 0 : i32
      %78 = tpu.memref_slice %arg3[%77, %c0_i32_40] : memref<100x128xf32, #tpu.memory_space<any>> -> memref<1x128xf32, #tpu.memory_space<any>>
      %c0_i32_41 = arith.constant 0 : i32
      %79 = tpu.memref_slice %arg8[%c0_i32_38, %c3_i32, %c0_i32_41] : memref<2x8x128xf32, #tpu.memory_space<vmem>> -> memref<1x1x128xf32, #tpu.memory_space<vmem>>
      %80 = tpu.memref_squeeze %79 : memref<1x1x128xf32, #tpu.memory_space<vmem>> -> memref<1x128xf32, #tpu.memory_space<vmem>>
      %81 = tpu.memref_slice %arg9[%c0_i32_39] : memref<2x!tpu.dma_semaphore, #tpu.memory_space<semaphore_mem>> -> memref<1x!tpu.dma_semaphore, #tpu.memory_space<semaphore_mem>>
      %82 = tpu.memref_squeeze %81 : memref<1x!tpu.dma_semaphore, #tpu.memory_space<semaphore_mem>> -> memref<!tpu.dma_semaphore, #tpu.memory_space<semaphore_mem>>
      tpu.enqueue_dma source(%78 : memref<1x128xf32, #tpu.memory_space<any>>) target(%80 : memref<1x128xf32, #tpu.memory_space<vmem>>) target_semaphore(%82 : memref<!tpu.dma_semaphore, #tpu.memory_space<semaphore_mem>>)
      %c4_i32 = arith.constant 4 : i32
      %83 = arith.addi %50, %c4_i32 : i32
      %84 = arith.index_cast %83 : i32 to index
      %85 = memref.load %arg2[%84] : memref<16xi32, #tpu.memory_space<smem>>
      %c0_i32_42 = arith.constant 0 : i32
      %c0_i32_43 = arith.constant 0 : i32
      %c0_i32_44 = arith.constant 0 : i32
      %86 = tpu.memref_slice %arg3[%85, %c0_i32_44] : memref<100x128xf32, #tpu.memory_space<any>> -> memref<1x128xf32, #tpu.memory_space<any>>
      %c0_i32_45 = arith.constant 0 : i32
      %87 = tpu.memref_slice %arg8[%c0_i32_42, %c4_i32, %c0_i32_45] : memref<2x8x128xf32, #tpu.memory_space<vmem>> -> memref<1x1x128xf32, #tpu.memory_space<vmem>>
      %88 = tpu.memref_squeeze %87 : memref<1x1x128xf32, #tpu.memory_space<vmem>> -> memref<1x128xf32, #tpu.memory_space<vmem>>
      %89 = tpu.memref_slice %arg9[%c0_i32_43] : memref<2x!tpu.dma_semaphore, #tpu.memory_space<semaphore_mem>> -> memref<1x!tpu.dma_semaphore, #tpu.memory_space<semaphore_mem>>
      %90 = tpu.memref_squeeze %89 : memref<1x!tpu.dma_semaphore, #tpu.memory_space<semaphore_mem>> -> memref<!tpu.dma_semaphore, #tpu.memory_space<semaphore_mem>>
      tpu.enqueue_dma source(%86 : memref<1x128xf32, #tpu.memory_space<any>>) target(%88 : memref<1x128xf32, #tpu.memory_space<vmem>>) target_semaphore(%90 : memref<!tpu.dma_semaphore, #tpu.memory_space<semaphore_mem>>)
      %c5_i32 = arith.constant 5 : i32
      %91 = arith.addi %50, %c5_i32 : i32
      %92 = arith.index_cast %91 : i32 to index
      %93 = memref.load %arg2[%92] : memref<16xi32, #tpu.memory_space<smem>>
      %c0_i32_46 = arith.constant 0 : i32
      %c0_i32_47 = arith.constant 0 : i32
      %c0_i32_48 = arith.constant 0 : i32
      %94 = tpu.memref_slice %arg3[%93, %c0_i32_48] : memref<100x128xf32, #tpu.memory_space<any>> -> memref<1x128xf32, #tpu.memory_space<any>>
      %c0_i32_49 = arith.constant 0 : i32
      %95 = tpu.memref_slice %arg8[%c0_i32_46, %c5_i32, %c0_i32_49] : memref<2x8x128xf32, #tpu.memory_space<vmem>> -> memref<1x1x128xf32, #tpu.memory_space<vmem>>
      %96 = tpu.memref_squeeze %95 : memref<1x1x128xf32, #tpu.memory_space<vmem>> -> memref<1x128xf32, #tpu.memory_space<vmem>>
      %97 = tpu.memref_slice %arg9[%c0_i32_47] : memref<2x!tpu.dma_semaphore, #tpu.memory_space<semaphore_mem>> -> memref<1x!tpu.dma_semaphore, #tpu.memory_space<semaphore_mem>>
      %98 = tpu.memref_squeeze %97 : memref<1x!tpu.dma_semaphore, #tpu.memory_space<semaphore_mem>> -> memref<!tpu.dma_semaphore, #tpu.memory_space<semaphore_mem>>
      tpu.enqueue_dma source(%94 : memref<1x128xf32, #tpu.memory_space<any>>) target(%96 : memref<1x128xf32, #tpu.memory_space<vmem>>) target_semaphore(%98 : memref<!tpu.dma_semaphore, #tpu.memory_space<semaphore_mem>>)
      %c6_i32 = arith.constant 6 : i32
      %99 = arith.addi %50, %c6_i32 : i32
      %100 = arith.index_cast %99 : i32 to index
      %101 = memref.load %arg2[%100] : memref<16xi32, #tpu.memory_space<smem>>
      %c0_i32_50 = arith.constant 0 : i32
      %c0_i32_51 = arith.constant 0 : i32
      %c0_i32_52 = arith.constant 0 : i32
      %102 = tpu.memref_slice %arg3[%101, %c0_i32_52] : memref<100x128xf32, #tpu.memory_space<any>> -> memref<1x128xf32, #tpu.memory_space<any>>
      %c0_i32_53 = arith.constant 0 : i32
      %103 = tpu.memref_slice %arg8[%c0_i32_50, %c6_i32, %c0_i32_53] : memref<2x8x128xf32, #tpu.memory_space<vmem>> -> memref<1x1x128xf32, #tpu.memory_space<vmem>>
      %104 = tpu.memref_squeeze %103 : memref<1x1x128xf32, #tpu.memory_space<vmem>> -> memref<1x128xf32, #tpu.memory_space<vmem>>
      %105 = tpu.memref_slice %arg9[%c0_i32_51] : memref<2x!tpu.dma_semaphore, #tpu.memory_space<semaphore_mem>> -> memref<1x!tpu.dma_semaphore, #tpu.memory_space<semaphore_mem>>
      %106 = tpu.memref_squeeze %105 : memref<1x!tpu.dma_semaphore, #tpu.memory_space<semaphore_mem>> -> memref<!tpu.dma_semaphore, #tpu.memory_space<semaphore_mem>>
      tpu.enqueue_dma source(%102 : memref<1x128xf32, #tpu.memory_space<any>>) target(%104 : memref<1x128xf32, #tpu.memory_space<vmem>>) target_semaphore(%106 : memref<!tpu.dma_semaphore, #tpu.memory_space<semaphore_mem>>)
      %c7_i32 = arith.constant 7 : i32
      %107 = arith.addi %50, %c7_i32 : i32
      %108 = arith.index_cast %107 : i32 to index
      %109 = memref.load %arg2[%108] : memref<16xi32, #tpu.memory_space<smem>>
      %c0_i32_54 = arith.constant 0 : i32
      %c0_i32_55 = arith.constant 0 : i32
      %c0_i32_56 = arith.constant 0 : i32
      %110 = tpu.memref_slice %arg3[%109, %c0_i32_56] : memref<100x128xf32, #tpu.memory_space<any>> -> memref<1x128xf32, #tpu.memory_space<any>>
      %c0_i32_57 = arith.constant 0 : i32
      %111 = tpu.memref_slice %arg8[%c0_i32_54, %c7_i32, %c0_i32_57] : memref<2x8x128xf32, #tpu.memory_space<vmem>> -> memref<1x1x128xf32, #tpu.memory_space<vmem>>
      %112 = tpu.memref_squeeze %111 : memref<1x1x128xf32, #tpu.memory_space<vmem>> -> memref<1x128xf32, #tpu.memory_space<vmem>>
      %113 = tpu.memref_slice %arg9[%c0_i32_55] : memref<2x!tpu.dma_semaphore, #tpu.memory_space<semaphore_mem>> -> memref<1x!tpu.dma_semaphore, #tpu.memory_space<semaphore_mem>>
      %114 = tpu.memref_squeeze %113 : memref<1x!tpu.dma_semaphore, #tpu.memory_space<semaphore_mem>> -> memref<!tpu.dma_semaphore, #tpu.memory_space<semaphore_mem>>
      tpu.enqueue_dma source(%110 : memref<1x128xf32, #tpu.memory_space<any>>) target(%112 : memref<1x128xf32, #tpu.memory_space<vmem>>) target_semaphore(%114 : memref<!tpu.dma_semaphore, #tpu.memory_space<semaphore_mem>>)
      %c8_i32_58 = arith.constant 8 : i32
    } else {
    }
    %c0_i32_5 = arith.constant 0 : i32
    %c0_i32_6 = arith.constant 0 : i32
    %13 = tpu.memref_slice %arg3[%c0_i32_5, %c0_i32_6] : memref<100x128xf32, #tpu.memory_space<any>> -> memref<8x128xf32, #tpu.memory_space<any>>
    %c0_i32_7 = arith.constant 0 : i32
    %c0_i32_8 = arith.constant 0 : i32
    %14 = tpu.memref_slice %arg8[%9, %c0_i32_7, %c0_i32_8] : memref<2x8x128xf32, #tpu.memory_space<vmem>> -> memref<1x8x128xf32, #tpu.memory_space<vmem>>
    %15 = tpu.memref_squeeze %14 : memref<1x8x128xf32, #tpu.memory_space<vmem>> -> memref<8x128xf32, #tpu.memory_space<vmem>>
    %16 = tpu.memref_slice %arg9[%9] : memref<2x!tpu.dma_semaphore, #tpu.memory_space<semaphore_mem>> -> memref<1x!tpu.dma_semaphore, #tpu.memory_space<semaphore_mem>>
    %17 = tpu.memref_squeeze %16 : memref<1x!tpu.dma_semaphore, #tpu.memory_space<semaphore_mem>> -> memref<!tpu.dma_semaphore, #tpu.memory_space<semaphore_mem>>
    tpu.wait_dma2 semaphore(%17 : memref<!tpu.dma_semaphore, #tpu.memory_space<semaphore_mem>>) src(%13 : memref<8x128xf32, #tpu.memory_space<any>>) dst(%15 : memref<8x128xf32, #tpu.memory_space<vmem>>)
    %c8_i32 = arith.constant 8 : i32
    %18 = arith.muli %arg1, %c8_i32 : i32
    %19 = tpu.assume_multiple %18, 8 : i32
    %20 = arith.index_cast %9 : i32 to index
    %c0 = arith.constant 0 : index
    %c0_9 = arith.constant 0 : index
    %21 = vector.load %arg8[%20, %c0, %c0_9] : memref<2x8x128xf32, #tpu.memory_space<vmem>>, vector<1x8x128xf32>
    %22 = vector.shape_cast %21 : vector<1x8x128xf32> to vector<8x128xf32>
    %23 = arith.index_cast %19 : i32 to index
    %c0_10 = arith.constant 0 : index
    %24 = vector.load %arg4[%23, %c0_10] : memref<8x128xf32, #tpu.memory_space<vmem>>, vector<8x128xf32>
    %25 = arith.addf %22, %24 : vector<8x128xf32>
    %cst = arith.constant dense<0.000000e+00> : vector<8xf32>
    %26 = vector.multi_reduction <add>, %25, %cst [1] : vector<8x128xf32> to vector<8xf32>
    %27 = vector.shape_cast %26 : vector<8xf32> to vector<8x1xf32>
    %cst_11 = arith.constant 1.280000e+02 : f32
    %28 = vector.broadcast %cst_11 : f32 to vector<8x1xf32>
    %29 = arith.divf %27, %28 : vector<8x1xf32>
    %30 = vector.broadcast %29 : vector<8x1xf32> to vector<8x128xf32>
    %31 = arith.subf %25, %30 : vector<8x128xf32>
    %32 = arith.mulf %31, %31 : vector<8x128xf32>
    %cst_12 = arith.constant dense<0.000000e+00> : vector<8xf32>
    %33 = vector.multi_reduction <add>, %32, %cst_12 [1] : vector<8x128xf32> to vector<8xf32>
    %34 = vector.shape_cast %33 : vector<8xf32> to vector<8x1xf32>
    %cst_13 = arith.constant 1.280000e+02 : f32
    %35 = vector.broadcast %cst_13 : f32 to vector<8x1xf32>
    %36 = arith.divf %34, %35 : vector<8x1xf32>
    %cst_14 = arith.constant 9.99999996E-13 : f32
    %37 = vector.broadcast %cst_14 : f32 to vector<8x1xf32>
    %38 = arith.addf %36, %37 : vector<8x1xf32>
    %39 = math.rsqrt %38 : vector<8x1xf32>
    %40 = vector.broadcast %39 : vector<8x1xf32> to vector<8x128xf32>
    %41 = arith.mulf %31, %40 : vector<8x128xf32>
    %c0_15 = arith.constant 0 : index
    %c0_16 = arith.constant 0 : index
    %42 = vector.load %arg5[%c0_15, %c0_16] : memref<1x128xf32, #tpu.memory_space<vmem>>, vector<1x128xf32>
    %43 = vector.broadcast %42 : vector<1x128xf32> to vector<8x128xf32>
    %44 = arith.mulf %41, %43 : vector<8x128xf32>
    %c0_17 = arith.constant 0 : index
    %c0_18 = arith.constant 0 : index
    %45 = vector.load %arg6[%c0_17, %c0_18] : memref<1x128xf32, #tpu.memory_space<vmem>>, vector<1x128xf32>
    %46 = vector.broadcast %45 : vector<1x128xf32> to vector<8x128xf32>
    %47 = arith.addf %44, %46 : vector<8x128xf32>
    %c0_19 = arith.constant 0 : index
    %c0_20 = arith.constant 0 : index
    %48 = vector.load %arg7[%c0_19, %c0_20] : memref<8x128xf32, #tpu.memory_space<vmem>>, vector<8x128xf32>
    tpu.vector_store %arg7[%c0_19, %c0_20], %47 {strides = array<i32>} : memref<8x128xf32, #tpu.memory_space<vmem>>, vector<8x128xf32>,
    return
  }
  func.func @transform_1(%arg0: i32, %arg1: i32, %arg2: memref<16xi32, #tpu.memory_space<smem>>) -> (i32, i32) {
    %c0_i32 = arith.constant 0 : i32
    %c0_i32_0 = arith.constant 0 : i32
    %c0_i32_1 = arith.constant 0 : i32
    return %c0_i32, %c0_i32_0 : i32, i32
  }
  func.func @transform_2(%arg0: i32, %arg1: i32, %arg2: memref<16xi32, #tpu.memory_space<smem>>) -> (i32, i32) {
    %c0_i32 = arith.constant 0 : i32
    %c0_i32_0 = arith.constant 0 : i32
    %c0_i32_1 = arith.constant 0 : i32
    return %c0_i32, %c0_i32_0 : i32, i32
  }
  func.func @transform_3(%arg0: i32, %arg1: i32, %arg2: memref<16xi32, #tpu.memory_space<smem>>) -> (i32, i32) {
    %c0_i32 = arith.constant 0 : i32
    %c0_i32_0 = arith.constant 0 : i32
    %c0_i32_1 = arith.constant 0 : i32
    return %c0_i32, %c0_i32_0 : i32, i32
  }
  func.func @transform_4(%arg0: i32, %arg1: i32, %arg2: memref<16xi32, #tpu.memory_space<smem>>) -> (i32, i32) {
    %c1_i32 = arith.constant 1 : i32
    %0 = arith.muli %arg0, %c1_i32 : i32
    %1 = arith.addi %0, %arg1 : i32
    %c0_i32 = arith.constant 0 : i32
    %c0_i32_0 = arith.constant 0 : i32
    return %1, %c0_i32 : i32, i32
  }
}

</mosaic_0001>

<llo_original>
// kernel: tpu_custom_call.1
$region0: #{tpu_custom_call.1}
  #allocation0 [shape = 'u32[]', space=smem, size = 0x4, offset = 0x4, fixed_abs, tag = 'smem constant byte address 0x4 - core index']
  #allocation1 [shape = 'u32[144,128]{1,0:T(1,128)}', space=vmem, size = 0x12000, scoped, tag = 'internal scratch']
  #allocation2 [shape = 'f32[2,8,128]{2,1,0:T(8,128)}', space=vmem, size = 0x2000, scoped, tag = 'scratch operand']
  #allocation3 [shape = 's32[2]{0}', space=sflag, size = 0x8, scoped, tag = 'scratch operand']
  #allocation4 [shape = 's32[1]{0}', space=sflag, size = 0x4, scoped, tag = 'scoped memory for tpu_custom_call.1']
  #allocation5 [shape = 'u8[512]{0}', space=smem, size = 0x200, scoped, tag = 'prefetched SMEM operand 0']
  #allocation10 [shape = 's32[]', space=sflag, size = 0x4, offset = 0, fixed_abs, tag = 'sflag constant byte address 0x0 - dummy sync flag']
  #allocation11 [shape = 's32[]', space=sflag, size = 0x4, offset = 0, fixed_abs, tag = 'sflag constant byte address 0x0 - dummy sync flag']
  #allocation12 [shape = 'u32[]', space=smem, size = 0x4, offset = 0x44, fixed_abs, tag = 'smem constant byte address 0x44 - assertion arg 0']
  #allocation13 [shape = 'u32[]', space=smem, size = 0x4, offset = 0x48, fixed_abs, tag = 'smem constant byte address 0x48 - assertion arg 1']
  #allocation14 [shape = 's32[]', space=sflag, size = 0x4, offset = 0, fixed_abs, tag = 'sflag constant byte address 0x0 - dummy sync flag']
  #allocation15 [shape = 's32[]', space=sflag, size = 0x4, offset = 0, fixed_abs, tag = 'sflag constant byte address 0x0 - dummy sync flag']
  #allocation16 [shape = 's32[]', space=sflag, size = 0x4, offset = 0, fixed_abs, tag = 'sflag constant byte address 0x0 - dummy sync flag']
  #allocation17 [shape = 's32[]', space=sflag, size = 0x4, offset = 0, fixed_abs, tag = 'sflag constant byte address 0x0 - dummy sync flag']
  #allocation18 [shape = 's32[]', space=sflag, size = 0x4, offset = 0, fixed_abs, tag = 'sflag constant byte address 0x0 - dummy sync flag']
  #allocation19 [shape = 's32[]', space=sflag, size = 0x4, offset = 0, fixed_abs, tag = 'sflag constant byte address 0x0 - dummy sync flag']
  #allocation20 [shape = 's32[]', space=sflag, size = 0x4, offset = 0, fixed_abs, tag = 'sflag constant byte address 0x0 - dummy sync flag']
  #allocation21 [shape = 's32[]', space=sflag, size = 0x4, offset = 0, fixed_abs, tag = 'sflag constant byte address 0x0 - dummy sync flag']
  #allocation22 [shape = 's32[]', space=sflag, size = 0x4, offset = 0, fixed_abs, tag = 'sflag constant byte address 0x0 - dummy sync flag']
  #allocation23 [shape = 's32[]', space=sflag, size = 0x4, offset = 0, fixed_abs, tag = 'sflag constant byte address 0x0 - dummy sync flag']
  #allocation24 [shape = 's32[]', space=sflag, size = 0x4, offset = 0, fixed_abs, tag = 'sflag constant byte address 0x0 - dummy sync flag']
  #allocation25 [shape = 's32[]', space=sflag, size = 0x4, offset = 0, fixed_abs, tag = 'sflag constant byte address 0x0 - dummy sync flag']
  #allocation26 [shape = 's32[]', space=sflag, size = 0x4, offset = 0, fixed_abs, tag = 'sflag constant byte address 0x0 - dummy sync flag']
  #allocation27 [shape = 's32[]', space=sflag, size = 0x4, offset = 0, fixed_abs, tag = 'sflag constant byte address 0x0 - dummy sync flag']
  %s0 = inlined_call_operand.hbm [shape: s32[16], index: 0, kind: input, shape index: {}]
  %s1 = inlined_call_operand.hbm [shape: f32[100,128], index: 1, kind: input, shape index: {}]
  %s2 = inlined_call_operand.hbm [shape: f32[8,128], index: 2, kind: input, shape index: {}]
  %s3 = inlined_call_operand.vmem [shape: f32[1,128], index: 3, kind: input, shape index: {}]
  %s4 = inlined_call_operand.vmem [shape: f32[1,128], index: 4, kind: input, shape index: {}]
  %s5 = inlined_call_operand.hbm [shape: f32[16,128], index: 5, kind: output, shape index: {}]
  %s6 = sld [smem:[#allocation0]]
  $region85: #{tpu_custom_call.1} parent=0
    _
  %s8 = ssub.s32 1, %s6
  %s9 = scalar_select 0, %s8, %s6
  %11 = dma.hbm_to_smem %s0, 16, [#allocation5], [#allocation4]
  %12 = dma.done [#allocation4], 16
  %13 = sfence
  $region1: #{tpu_custom_call.1} parent=0
    #allocation6 [shape = 'u8[4096]{0}', space=vmem, size = 0x1000, scoped, tag = 'input window, operand 2, single buffered']
    #allocation7 [shape = 's32[2]{0}', space=sflag, size = 0x8, scoped, tag = 'scoped memory for tpu_custom_call.1']
    #allocation8 [shape = 's32[2]{0}', space=sflag, size = 0x8, scoped, tag = 'scoped memory for tpu_custom_call.1']
    #allocation9 [shape = 'u8[8192]{0}', space=vmem, size = 0x2000, scoped, tag = 'output window, operand 0']
    %14 = vsyncpa [#allocation7], 0
    %15 = vsyncpa [#allocation8], 0
    %s16 = scalar_lea.sflag [#allocation8], 1
    %17 = vsyncpa %s16, 0
    loop: start=0, step=1, limit=4
    $region2: #{tpu_custom_call.1} parent=1 // loop_pre_header
      _
    $region3: #{tpu_custom_call.1} parent=1 // loop_header
      %s19 = sphi 0, %s23
      %p20 = scmp.ge.s32.totalorder %s19, 4
      %s26 = sphi 0, %s38
      %s27 = sphi 0, %s34
      %s28 = sphi 0, %s26
      %s29 = sphi 0, %s27
      %s30 = sphi 0, %s28
      %s31 = sphi 0, %s29
      %s39 = sphi 0, %s39
      %s41 = sphi 0, %s39
      %s42 = sphi 0, %s41
      %s56 = sphi 0, %s42
      %s60 = sphi 0, %s60
      %s62 = sphi 0, %s60
      %s63 = sphi 0, %s62
      %s77 = sphi 0, %s63
      %s81 = sphi 0, %s81
      %s83 = sphi 0, %s81
      %s84 = sphi 0, %s83
      %s98 = sphi 0, %s84
      %s106 = sphi 0, %s108
      %s109 = sphi 0, %s106
      %s110 = sphi 0, %s109
      %s126 = sphi 0, %s110
    $region4: #{tpu_custom_call.1} parent=1 // loop_header_branch
      %22 = sbr.rel (%p20) target = $region8
    $region5: #{tpu_custom_call.1} parent=1 // loop_body
      %s24 = ssub.s32 %s19, 1
      %s25 = ssub.s32 %s19, 2
      %s32 = sadd.s32 1, %s27
      %p33 = scmp.ge.s32.totalorder %s32, 1
      %s34 = scalar_select %p33, 0, %s32
      %s35 = sadd.s32 1, %s26
      %s36 = scalar_select %p33, %s35, %s26
      %p37 = scmp.ge.s32.totalorder %s36, 2
      %s38 = scalar_select %p37, 0, %s36
      %s40 = sadd.s32 %s39, 1
      %p43 = scmp.eq.s32.totalorder %s19, 1
      %p44 = scmp.ne.s32.totalorder %s39, %s41
      %p45 = scmp.eq.s32.totalorder %s19, 0
      %p46 = por %p44, %p45
      %p47 = scmp.ne.s32.totalorder %s39, %s41
      %p48 = scmp.eq.s32.totalorder %s24, 1
      %p49 = por %p47, %p48
      %p50 = scmp.ne.s32.totalorder %s41, %s42
      %p51 = scmp.eq.s32.totalorder %s24, 0
      %p52 = por %p50, %p51
      %p53 = scmp.ne.s32.totalorder %s41, %s42
      %p54 = scmp.eq.s32.totalorder %s25, 1
      %p55 = por %p53, %p54
      %p57 = scmp.ne.s32.totalorder %s42, %s56
      %p58 = scmp.eq.s32.totalorder %s25, 0
      %p59 = por %p57, %p58
      %s61 = sadd.s32 %s60, 1
      %p64 = scmp.eq.s32.totalorder %s19, 1
      %p65 = scmp.ne.s32.totalorder %s60, %s62
      %p66 = scmp.eq.s32.totalorder %s19, 0
      %p67 = por %p65, %p66
      %p68 = scmp.ne.s32.totalorder %s60, %s62
      %p69 = scmp.eq.s32.totalorder %s24, 1
      %p70 = por %p68, %p69
      %p71 = scmp.ne.s32.totalorder %s62, %s63
      %p72 = scmp.eq.s32.totalorder %s24, 0
      %p73 = por %p71, %p72
      %p74 = scmp.ne.s32.totalorder %s62, %s63
      %p75 = scmp.eq.s32.totalorder %s25, 1
      %p76 = por %p74, %p75
      %p78 = scmp.ne.s32.totalorder %s63, %s77
      %p79 = scmp.eq.s32.totalorder %s25, 0
      %p80 = por %p78, %p79
      %s82 = sadd.s32 %s81, 1
      %p85 = scmp.eq.s32.totalorder %s19, 1
      %p86 = scmp.ne.s32.totalorder %s81, %s83
      %p87 = scmp.eq.s32.totalorder %s19, 0
      %p88 = por %p86, %p87
      %p89 = scmp.ne.s32.totalorder %s81, %s83
      %p90 = scmp.eq.s32.totalorder %s24, 1
      %p91 = por %p89, %p90
      %p92 = scmp.ne.s32.totalorder %s83, %s84
      %p93 = scmp.eq.s32.totalorder %s24, 0
      %p94 = por %p92, %p93
      %p95 = scmp.ne.s32.totalorder %s83, %s84
      %p96 = scmp.eq.s32.totalorder %s25, 1
      %p97 = por %p95, %p96
      %p99 = scmp.ne.s32.totalorder %s84, %s98
      %p100 = scmp.eq.s32.totalorder %s25, 0
      %p101 = por %p99, %p100
      %s102 = sadd.s32 %s26, %s27
      %s103 = sadd.s32 %s38, %s34
      %s104 = ssub.s32 %s102, %s103
      %p105 = scmp.eq.s32.totalorder %s104, 0
      %s107 = sadd.s32 %s106, 1
      %s108 = scalar_select %p105, %s106, %s107
      %p111 = pneg %p105
      %p112 = scmp.eq.s32.totalorder %s19, 1
      %p113 = por %p111, %p112
      %p114 = scmp.ne.s32.totalorder %s106, %s109
      %p115 = scmp.eq.s32.totalorder %s19, 0
      %p116 = por %p114, %p115
      %p117 = scmp.ne.s32.totalorder %s106, %s109
      %p118 = scmp.eq.s32.totalorder %s24, 1
      %p119 = por %p117, %p118
      %p120 = scmp.ne.s32.totalorder %s109, %s110
      %p121 = scmp.eq.s32.totalorder %s24, 0
      %p122 = por %p120, %p121
      %p123 = scmp.ne.s32.totalorder %s109, %s110
      %p124 = scmp.eq.s32.totalorder %s25, 1
      %p125 = por %p123, %p124
      %p127 = scmp.ne.s32.totalorder %s110, %s126
      %p128 = scmp.eq.s32.totalorder %s25, 0
      %p129 = por %p127, %p128
      %p130 = scmp.le.s32.totalorder 1, %s19
      %p131 = scmp.lt.s32.totalorder %s19, 3
      %p132 = pnand %p130, %p131
      %p133 = pneg %p132
      // Predicated region
      $region9: #{tpu_custom_call.1} parent=5 // pred_check
        _
      $region10: #{tpu_custom_call.1} parent=5 // pred_check_branch
        %135 = sbr.rel (%p132) target = $region12
      $region11: #{tpu_custom_call.1} parent=5 // pred_region
        %s136 = ssub.s32 %s19, 1
        // Predicated region
        $region13: #{tpu_custom_call.1} parent=11 // pred_check
          %p137 = pneg %p52
        $region14: #{tpu_custom_call.1} parent=11 // pred_check_branch
          %139 = sbr.rel (%p137) target = $region16
        $region15: #{tpu_custom_call.1} parent=11 // pred_region
          %s141 = ssub.s32 128, 128
          %142 = vsyncadd [#allocation7], %s141
          %s144 = sshll.u32 [#allocation6], 4
          %s145 = int_to_ptr.vmem [resolvable:$true] %s144
          %147 = dma.hbm_to_vmem [thread:$0]  %s2, 128, %s145, [#allocation7]
        $region16: #{tpu_custom_call.1} parent=11 // pred_fallthru
          _
        // Predicated region
        $region17: #{tpu_custom_call.1} parent=11 // pred_check
          %p148 = pneg %p73
        $region18: #{tpu_custom_call.1} parent=11 // pred_check_branch
          %150 = sbr.rel (%p148) target = $region20
        $region19: #{tpu_custom_call.1} parent=11 // pred_region
          _
        $region20: #{tpu_custom_call.1} parent=11 // pred_fallthru
          _
        // Predicated region
        $region21: #{tpu_custom_call.1} parent=11 // pred_check
          %p151 = pneg %p94
        $region22: #{tpu_custom_call.1} parent=11 // pred_check_branch
          %153 = sbr.rel (%p151) target = $region24
        $region23: #{tpu_custom_call.1} parent=11 // pred_region
          _
        $region24: #{tpu_custom_call.1} parent=11 // pred_fallthru
          _
      $region12: #{tpu_custom_call.1} parent=5 // pred_fallthru
        _
      %p154 = scmp.lt.s32.totalorder %s19, 2
      // Predicated region
      $region25: #{tpu_custom_call.1} parent=5 // pred_check
        %p155 = pneg %p154
      $region26: #{tpu_custom_call.1} parent=5 // pred_check_branch
        %157 = sbr.rel (%p155) target = $region28
      $region27: #{tpu_custom_call.1} parent=5 // pred_region
        _
      $region28: #{tpu_custom_call.1} parent=5 // pred_fallthru
        _
      %p158 = scmp.le.s32.totalorder 1, %s19
      %p159 = scmp.lt.s32.totalorder %s19, 3
      %p160 = pnand %p158, %p159
      %p161 = pneg %p160
      // Predicated region
      $region29: #{tpu_custom_call.1} parent=5 // pred_check
        _
      $region30: #{tpu_custom_call.1} parent=5 // pred_check_branch
        %163 = sbr.rel (%p160) target = $region32
      $region31: #{tpu_custom_call.1} parent=5 // pred_region
        %s164 = ssub.s32 %s19, 1
        // Predicated region
        $region33: #{tpu_custom_call.1} parent=31 // pred_check
          %p165 = pneg %p52
        $region34: #{tpu_custom_call.1} parent=31 // pred_check_branch
          %167 = sbr.rel (%p165) target = $region36
        $region35: #{tpu_custom_call.1} parent=31 // pred_region
          %168 = dma.done [#allocation7], 128
        $region36: #{tpu_custom_call.1} parent=31 // pred_fallthru
          _
        %p169 = pneg %p52
        %p170 = pneg %p49
        %p171 = pneg %p73
        %p172 = pneg %p70
        %p173 = pneg %p94
        %p174 = pneg %p91
        %p175 = pneg %p122
        %p176 = pneg %p119
        %s177 = sand.u32 %s109, 1
        %s178 = scalar_lea.sflag [#allocation8], %s177
        %s179 = sand.u32 %s109, 1
        %s180 = smul.addr %s179, 8
        %s181 = scalar_lea.vmem [#allocation9], %s180
        %s182 = sadd.s32 %s28, %s29
        %p183 = scmp.lt.s32.totalorder %s29, 0
        %s184 = ssub.s32 0, %s29
        %s185 = scalar_select %p183, %s184, %s29
        %s186 = sand.u32 %s185, 1
        %s187 = ssub.s32 0, %s186
        %s188 = scalar_select %p183, %s187, %s186
        %p189 = scmp.ne.s32.totalorder %s188, 0
        %p190 = scmp.lt.s32.totalorder %s188, 0
        %p191 = pnand %p190, %p189
        %p192 = pneg %p191
        %s193 = sadd.s32 %s188, 2
        %s194 = scalar_select %p192, %s193, %s188
        %p195 = scmp.eq.s32.totalorder %s29, 0
        // Predicated region
        $region37: #{tpu_custom_call.1} parent=31 // pred_check
          %p196 = pneg %p195
        $region38: #{tpu_custom_call.1} parent=31 // pred_check_branch
          %198 = sbr.rel (%p196) target = $region40
        $region39: #{tpu_custom_call.1} parent=31 // pred_region
          %s199 = smul.u32 %s28, 8
          %s200 = sld [smem:[#allocation5 + %s199]]
          %s201 = smul.addr %s200, 16
          %s202 = scalar_lea.hbm %s1, %s201
          // Predicated region
          $region41: #{tpu_custom_call.1} parent=39 // pred_check
            _
          $region42: #{tpu_custom_call.1} parent=39 // pred_check_branch
            %204 = sbr.rel target = $region44
          $region43: #{tpu_custom_call.1} parent=39 // pred_region
            %205 = sst [smem:[#allocation12]] [#allocation11]
            %206 = sst [smem:[#allocation13]] [#allocation10]
          $region44: #{tpu_custom_call.1} parent=39 // pred_fallthru
            _
          %208 = shalt.err (0)
          %s210 = sshll.u32 [#allocation2], 4
          %s211 = int_to_ptr.vmem [resolvable:$true] %s210
          %213 = dma.hbm_to_vmem [thread:$0]  %s202, 16, %s211, [#allocation3]
          %s214 = sadd.s32 %s199, 1
          %s215 = sld [smem:[#allocation5 + %s214]]
          %s216 = smul.addr %s215, 16
          %s217 = scalar_lea.hbm %s1, %s216
          %s218 = scalar_lea.vmem [#allocation2], 1
          // Predicated region
          $region45: #{tpu_custom_call.1} parent=39 // pred_check
            _
          $region46: #{tpu_custom_call.1} parent=39 // pred_check_branch
            %220 = sbr.rel target = $region48
          $region47: #{tpu_custom_call.1} parent=39 // pred_region
            %221 = sst [smem:[#allocation12]] [#allocation15]
            %222 = sst [smem:[#allocation13]] [#allocation14]
          $region48: #{tpu_custom_call.1} parent=39 // pred_fallthru
            _
          %224 = shalt.err (0)
          %s226 = sshll.u32 %s218, 4
          %s227 = int_to_ptr.vmem [resolvable:$true] %s226
          %229 = dma.hbm_to_vmem [thread:$0]  %s217, 16, %s227, [#allocation3]
          %s230 = sadd.s32 %s199, 2
          %s231 = sld [smem:[#allocation5 + %s230]]
          %s232 = smul.addr %s231, 16
          %s233 = scalar_lea.hbm %s1, %s232
          %s234 = scalar_lea.vmem [#allocation2], 2
          // Predicated region
          $region49: #{tpu_custom_call.1} parent=39 // pred_check
            _
          $region50: #{tpu_custom_call.1} parent=39 // pred_check_branch
            %236 = sbr.rel target = $region52
          $region51: #{tpu_custom_call.1} parent=39 // pred_region
            %237 = sst [smem:[#allocation12]] [#allocation17]
            %238 = sst [smem:[#allocation13]] [#allocation16]
          $region52: #{tpu_custom_call.1} parent=39 // pred_fallthru
            _
          %240 = shalt.err (0)
          %s242 = sshll.u32 %s234, 4
          %s243 = int_to_ptr.vmem [resolvable:$true] %s242
          %245 = dma.hbm_to_vmem [thread:$0]  %s233, 16, %s243, [#allocation3]
          %s246 = sadd.s32 %s199, 3
          %s247 = sld [smem:[#allocation5 + %s246]]
          %s248 = smul.addr %s247, 16
          %s249 = scalar_lea.hbm %s1, %s248
          %s250 = scalar_lea.vmem [#allocation2], 3
          // Predicated region
          $region53: #{tpu_custom_call.1} parent=39 // pred_check
            _
          $region54: #{tpu_custom_call.1} parent=39 // pred_check_branch
            %252 = sbr.rel target = $region56
          $region55: #{tpu_custom_call.1} parent=39 // pred_region
            %253 = sst [smem:[#allocation12]] [#allocation19]
            %254 = sst [smem:[#allocation13]] [#allocation18]
          $region56: #{tpu_custom_call.1} parent=39 // pred_fallthru
            _
          %256 = shalt.err (0)
          %s258 = sshll.u32 %s250, 4
          %s259 = int_to_ptr.vmem [resolvable:$true] %s258
          %261 = dma.hbm_to_vmem [thread:$0]  %s249, 16, %s259, [#allocation3]
          %s262 = sadd.s32 %s199, 4
          %s263 = sld [smem:[#allocation5 + %s262]]
          %s264 = smul.addr %s263, 16
          %s265 = scalar_lea.hbm %s1, %s264
          %s266 = scalar_lea.vmem [#allocation2], 4
          // Predicated region
          $region57: #{tpu_custom_call.1} parent=39 // pred_check
            _
          $region58: #{tpu_custom_call.1} parent=39 // pred_check_branch
            %268 = sbr.rel target = $region60
          $region59: #{tpu_custom_call.1} parent=39 // pred_region
            %269 = sst [smem:[#allocation12]] [#allocation21]
            %270 = sst [smem:[#allocation13]] [#allocation20]
          $region60: #{tpu_custom_call.1} parent=39 // pred_fallthru
            _
          %272 = shalt.err (0)
          %s274 = sshll.u32 %s266, 4
          %s275 = int_to_ptr.vmem [resolvable:$true] %s274
          %277 = dma.hbm_to_vmem [thread:$0]  %s265, 16, %s275, [#allocation3]
          %s278 = sadd.s32 %s199, 5
          %s279 = sld [smem:[#allocation5 + %s278]]
          %s280 = smul.addr %s279, 16
          %s281 = scalar_lea.hbm %s1, %s280
          %s282 = scalar_lea.vmem [#allocation2], 5
          // Predicated region
          $region61: #{tpu_custom_call.1} parent=39 // pred_check
            _
          $region62: #{tpu_custom_call.1} parent=39 // pred_check_branch
            %284 = sbr.rel target = $region64
          $region63: #{tpu_custom_call.1} parent=39 // pred_region
            %285 = sst [smem:[#allocation12]] [#allocation23]
            %286 = sst [smem:[#allocation13]] [#allocation22]
          $region64: #{tpu_custom_call.1} parent=39 // pred_fallthru
            _
          %288 = shalt.err (0)
          %s290 = sshll.u32 %s282, 4
          %s291 = int_to_ptr.vmem [resolvable:$true] %s290
          %293 = dma.hbm_to_vmem [thread:$0]  %s281, 16, %s291, [#allocation3]
          %s294 = sadd.s32 %s199, 6
          %s295 = sld [smem:[#allocation5 + %s294]]
          %s296 = smul.addr %s295, 16
          %s297 = scalar_lea.hbm %s1, %s296
          %s298 = scalar_lea.vmem [#allocation2], 6
          // Predicated region
          $region65: #{tpu_custom_call.1} parent=39 // pred_check
            _
          $region66: #{tpu_custom_call.1} parent=39 // pred_check_branch
            %300 = sbr.rel target = $region68
          $region67: #{tpu_custom_call.1} parent=39 // pred_region
            %301 = sst [smem:[#allocation12]] [#allocation25]
            %302 = sst [smem:[#allocation13]] [#allocation24]
          $region68: #{tpu_custom_call.1} parent=39 // pred_fallthru
            _
          %304 = shalt.err (0)
          %s306 = sshll.u32 %s298, 4
          %s307 = int_to_ptr.vmem [resolvable:$true] %s306
          %309 = dma.hbm_to_vmem [thread:$0]  %s297, 16, %s307, [#allocation3]
          %s310 = sadd.s32 %s199, 7
          %s311 = sld [smem:[#allocation5 + %s310]]
          %s312 = smul.addr %s311, 16
          %s313 = scalar_lea.hbm %s1, %s312
          %s314 = scalar_lea.vmem [#allocation2], 7
          // Predicated region
          $region69: #{tpu_custom_call.1} parent=39 // pred_check
            _
          $region70: #{tpu_custom_call.1} parent=39 // pred_check_branch
            %316 = sbr.rel target = $region72
          $region71: #{tpu_custom_call.1} parent=39 // pred_region
            %317 = sst [smem:[#allocation12]] [#allocation27]
            %318 = sst [smem:[#allocation13]] [#allocation26]
          $region72: #{tpu_custom_call.1} parent=39 // pred_fallthru
            _
          %320 = shalt.err (0)
          %s322 = sshll.u32 %s314, 4
          %s323 = int_to_ptr.vmem [resolvable:$true] %s322
          %325 = dma.hbm_to_vmem [thread:$0]  %s313, 16, %s323, [#allocation3]
        $region40: #{tpu_custom_call.1} parent=31 // pred_fallthru
          _
        %s326 = smul.u32 %s194, 8
        %s327 = scalar_lea.vmem [#allocation2], %s326
        %s328 = scalar_lea.sflag [#allocation3], %s194
        %s329 = smul.u32 8, 1
        %s330 = sshll.u32 %s329, 4
        %331 = dma.done %s328, %s330
        %s332 = smul.u32 %s29, 8
        %v333 = vld [vmem:[%s327] sm:$0xff]
        %s334 = scalar_lea.vmem [#allocation6], %s332
        %v335 = vld [vmem:[%s334] sm:$0xff]
        %v336 = vadd.f32 %v333, %v335
        %337 = vadd.xlane.f32.xlu0 %v336
        %v338 = vpop.xlane.xlu0 %337
        %v339 = vrcp.pop 128.0
        %v340 = vmul.f32 %v338, %v339
        %v341 = vsub.f32 %v336, %v340
        %v342 = vmul.f32 %v341, %v341
        %343 = vadd.xlane.f32.xlu0 %v342
        %v344 = vpop.xlane.xlu0 %343
        %v345 = vmul.f32 %v344, %v339
        %v346 = vadd.f32 %v345, 1e-12
        %v347 = vrsqrt.pop %v346
        %v348 = vmul.f32 %v341, %v347
        %v349 = vld [vmem:[%s3] sm:$0x1]
        %v351 = vlaneseq
        %v352 = vshrl.u32 %v351, 7
        %v353 = vsub.s32 0, %v352
        %v354 = vrot.slane %v349, %v353
        %v356 = vmul.f32 %v348, %v354
        %v357 = vld [vmem:[%s4] sm:$0x1]
        %v359 = vlaneseq
        %v360 = vshrl.u32 %v359, 7
        %v361 = vsub.s32 0, %v360
        %v362 = vrot.slane %v357, %v361
        %v364 = vadd.f32 %v356, %v362
        %365 = vst [vmem:[%s181] sm:$0xff] %v364
        %s366 = sand.u32 %s109, 1
        %s367 = scalar_lea.sflag [#allocation8], %s366
        %s368 = sand.u32 %s109, 1
        %s369 = smul.addr %s368, 8
        %s370 = scalar_lea.vmem [#allocation9], %s369
        // Predicated region
        $region73: #{tpu_custom_call.1} parent=31 // pred_check
          %p371 = pneg %p119
        $region74: #{tpu_custom_call.1} parent=31 // pred_check_branch
          %373 = sbr.rel (%p371) target = $region76
        $region75: #{tpu_custom_call.1} parent=31 // pred_region
          %s374 = sadd.s32 %s28, %s29
          %s376 = ssub.s32 128, 128
          %377 = vsyncadd %s367, %s376
          %s378 = smul.addr %s374, 128
          %s379 = scalar_lea.hbm %s5, %s378
          %s381 = sshll.u32 %s370, 4
          %s382 = int_to_ptr.vmem [resolvable:$true] %s381
          %384 = dma.vmem_to_hbm [thread:$0]  %s382, 128, %s379, %s367
        $region76: #{tpu_custom_call.1} parent=31 // pred_fallthru
          _
      $region32: #{tpu_custom_call.1} parent=5 // pred_fallthru
        _
      %p385 = scmp.le.s32.totalorder 2, %s19
      // Predicated region
      $region77: #{tpu_custom_call.1} parent=5 // pred_check
        %p386 = pneg %p385
      $region78: #{tpu_custom_call.1} parent=5 // pred_check_branch
        %388 = sbr.rel (%p386) target = $region80
      $region79: #{tpu_custom_call.1} parent=5 // pred_region
        %s389 = ssub.s32 %s19, 2
        // Predicated region
        $region81: #{tpu_custom_call.1} parent=79 // pred_check
          %p390 = pneg %p125
        $region82: #{tpu_custom_call.1} parent=79 // pred_check_branch
          %392 = sbr.rel (%p390) target = $region84
        $region83: #{tpu_custom_call.1} parent=79 // pred_region
          %s393 = sand.u32 %s110, 1
          %s394 = scalar_lea.sflag [#allocation8], %s393
          %s395 = sand.u32 %s110, 1
          %s396 = smul.addr %s395, 8
          %s397 = scalar_lea.vmem [#allocation9], %s396
          %398 = dma.done %s394, 128
        $region84: #{tpu_custom_call.1} parent=79 // pred_fallthru
          _
      $region80: #{tpu_custom_call.1} parent=5 // pred_fallthru
        _
    $region6: #{tpu_custom_call.1} parent=1 // loop_footer
      %s23 = sadd.s32 1, %s19
    $region7: #{tpu_custom_call.1} parent=1 // loop_footer_branch
      %18 = sbr.rel target = $region3
    $region8: #{tpu_custom_call.1} parent=1 // loop_exit
      _
    %399 = vsyncpa [#allocation7], 1
    %s400 = scalar_lea.sflag [#allocation7], 1
    %401 = vsyncpa %s400, 1
    %402 = vsyncpa [#allocation8], 1
    %s403 = scalar_lea.sflag [#allocation8], 1
    %404 = vsyncpa %s403, 1
  %405 = vsyncmov [#allocation3]
  %s406 = vpop.sfrf %405
  %p407 = scmp.eq.s32.totalorder %s406, 0
  %p408 = pneg %p407
  %410 = shalt.err (%p408)
  %s411 = scalar_lea.sflag [#allocation3], 1
  %412 = vsyncmov %s411
  %s413 = vpop.sfrf %412
  %p414 = scmp.eq.s32.totalorder %s413, 0
  %p415 = pneg %p414
  %417 = shalt.err (%p415)

</llo_original>
